<compile_context>
chip_gen: v7x
topology: tpu7x:2x2x1
jax: 0.10.0
libtpu: 0.0.40
codegen_flags: <defaults>
</compile_context>

<pallas_src>
import functools

import jax
import jax.numpy as jnp
from jax.experimental import pallas as pl
from jax.experimental.pallas import tpu as pltpu

INPUT_SIZE = 4
HIDDEN_SIZE = 64
OUTPUT_SIZE = 3

LANE = 128  # TPU lane width


def _round_up(n, m):
    return ((n + m - 1) // m) * m


def mlp_kernel(xT_ref, w1_ref, b1_ref, w2_ref, b2_ref, oT_ref):
    """One batch tile in transposed [features, batch] layout.

    xT_ref: [IN, TILE_B]   w1_ref: [H, IN]   b1_ref: [H, 1]
    w2_ref: [O, H]         b2_ref: [O, 1]    oT_ref: [O, TILE_B]
    """
    xT = xT_ref[...]                       # [IN, TILE_B]
    w1 = w1_ref[...]                       # [H, IN]

    # fc1: K=4 contraction as 4 VPU FMAs (outer products) -- keeps the MXU
    # free and avoids a near-empty systolic pass.  Unrolled (trace-time loop).
    acc = b1_ref[...] + w1[:, 0:1] * xT[0:1, :]        # [H, TILE_B]
    for k in range(1, INPUT_SIZE):
        acc = acc + w1[:, k:k + 1] * xT[k:k + 1, :]
    h = jnp.maximum(acc, 0.0)              # ReLU on the VPU

    # fc2 on the MXU: [O, H] @ [H, TILE_B]; batch on the wide N axis.
    y = jnp.dot(w2_ref[...], h, preferred_element_type=jnp.float32)
    y = y + b2_ref[...]                    # [O, TILE_B] + [O, 1] broadcast
    oT_ref[...] = y.astype(oT_ref.dtype)


@functools.partial(jax.jit, static_argnames=("tile_b",))
def net_forward(x, w1, b1, w2, b2, *, tile_b=4096):
    """Forward pass of Net.

    x:  [B, INPUT_SIZE] f32
    w1: [HIDDEN_SIZE, INPUT_SIZE]   b1: [HIDDEN_SIZE]
    w2: [OUTPUT_SIZE, HIDDEN_SIZE]  b2: [OUTPUT_SIZE]
    Returns [B, OUTPUT_SIZE] f32.
    """
    B = x.shape[0]

    # Don't use a tile larger than the (lane-aligned) batch itself.
    tile_b = min(tile_b, _round_up(max(B, 1), LANE))
    num_tiles = pl.cdiv(B, tile_b)
    b_pad = num_tiles * tile_b

    # Lane-dense transposed layout; pad the ragged tail with zeros (the
    # padded columns are computed but sliced off below, never observed).
    xT = x.T                                            # [IN, B]
    if b_pad != B:
        xT = jnp.pad(xT, ((0, 0), (0, b_pad - B)))

    b1c = b1.reshape(HIDDEN_SIZE, 1)
    b2c = b2.reshape(OUTPUT_SIZE, 1)

    yT = pl.pallas_call(
        mlp_kernel,
        out_shape=jax.ShapeDtypeStruct((OUTPUT_SIZE, b_pad), x.dtype),
        grid=(num_tiles,),
        in_specs=[
            # x tile: streamed + double-buffered over the batch grid.
            pl.BlockSpec((INPUT_SIZE, tile_b), lambda i: (0, i)),
            # Weights / biases: constant index map -> resident in VMEM.
            pl.BlockSpec((HIDDEN_SIZE, INPUT_SIZE), lambda i: (0, 0)),
            pl.BlockSpec((HIDDEN_SIZE, 1), lambda i: (0, 0)),
            pl.BlockSpec((OUTPUT_SIZE, HIDDEN_SIZE), lambda i: (0, 0)),
            pl.BlockSpec((OUTPUT_SIZE, 1), lambda i: (0, 0)),
        ],
        out_specs=pl.BlockSpec((OUTPUT_SIZE, tile_b), lambda i: (0, i)),
        compiler_params=pltpu.CompilerParams(
            dimension_semantics=("parallel",),      # 2-TC sharding on v7x
            vmem_limit_bytes=32 * 1024 * 1024,
        ),
    )(xT, w1, b1c, w2, b2c)

    return yT[:, :B].T                                  # [B, OUTPUT_SIZE]


def init_params(key):
    """Deterministic init mimicking nn.Linear's uniform(-1/sqrt(fan_in)).

    Weights kept in PyTorch layout: [out_features, in_features].
    """
    k1, k2, k3, k4 = jax.random.split(key, 4)
    bound1 = 1.0 / jnp.sqrt(INPUT_SIZE)
    bound2 = 1.0 / jnp.sqrt(HIDDEN_SIZE)
    w1 = jax.random.uniform(k1, (HIDDEN_SIZE, INPUT_SIZE), jnp.float32,
                            minval=-bound1, maxval=bound1)
    b1 = jax.random.uniform(k2, (HIDDEN_SIZE,), jnp.float32,
                            minval=-bound1, maxval=bound1)
    w2 = jax.random.uniform(k3, (OUTPUT_SIZE, HIDDEN_SIZE), jnp.float32,
                            minval=-bound2, maxval=bound2)
    b2 = jax.random.uniform(k4, (OUTPUT_SIZE,), jnp.float32,
                            minval=-bound2, maxval=bound2)
    return w1, b1, w2, b2


if __name__ == "__main__":
    key = jax.random.PRNGKey(0)
    kx, kp = jax.random.split(key)

    batch = 8
    x = jax.random.normal(kx, (batch, INPUT_SIZE), jnp.float32)
    w1, b1, w2, b2 = init_params(kp)

    out = net_forward(x, w1, b1, w2, b2)
    out = jax.block_until_ready(out)

    # Plain-JAX reference of the same forward pass (PyTorch weight layout).
    ref = jnp.maximum(x @ w1.T + b1, 0.0) @ w2.T + b2
    assert out.shape == (batch, OUTPUT_SIZE)
    assert jnp.allclose(out, ref, atol=1e-4, rtol=1e-4)

    print("KERNEL_OK")
</pallas_src>

<mosaic_0001>
module attributes {stable_mosaic.version = 11 : i64} {
  func.func @mlp_kernel(%arg0: i32, %arg1: memref<4x128xf32, #tpu.memory_space<vmem>>, %arg2: memref<64x4xf32, #tpu.memory_space<vmem>>, %arg3: memref<64x1xf32, #tpu.memory_space<vmem>>, %arg4: memref<3x64xf32, #tpu.memory_space<vmem>>, %arg5: memref<3x1xf32, #tpu.memory_space<vmem>>, %arg6: memref<3x128xf32, #tpu.memory_space<vmem>>) attributes {dimension_semantics = [#tpu.dimension_semantics<parallel>], iteration_bounds = array<i64: 1>, scalar_prefetch = 0 : i64, scratch_operands = 0 : i64, tpu.core_type = #tpu.core_type<tc>, window_params = [{transform_indices = @transform_0, window_bounds = array<i64: 4, 128>}, {pipeline_mode = #tpu.pipeline_mode<synchronous>, transform_indices = @transform_1, window_bounds = array<i64: 64, 4>}, {pipeline_mode = #tpu.pipeline_mode<synchronous>, transform_indices = @transform_2, window_bounds = array<i64: 64, 1>}, {pipeline_mode = #tpu.pipeline_mode<synchronous>, transform_indices = @transform_3, window_bounds = array<i64: 3, 64>}, {pipeline_mode = #tpu.pipeline_mode<synchronous>, transform_indices = @transform_4, window_bounds = array<i64: 3, 1>}, {transform_indices = @transform_5, window_bounds = array<i64: 3, 128>}]} {
    %c0 = arith.constant 0 : index
    %c0_0 = arith.constant 0 : index
    %0 = vector.load %arg1[%c0, %c0_0] : memref<4x128xf32, #tpu.memory_space<vmem>>, vector<4x128xf32>
    %c0_1 = arith.constant 0 : index
    %c0_2 = arith.constant 0 : index
    %1 = vector.load %arg2[%c0_1, %c0_2] : memref<64x4xf32, #tpu.memory_space<vmem>>, vector<64x4xf32>
    %c0_3 = arith.constant 0 : index
    %c0_4 = arith.constant 0 : index
    %2 = vector.load %arg3[%c0_3, %c0_4] : memref<64x1xf32, #tpu.memory_space<vmem>>, vector<64x1xf32>
    %3 = vector.extract_strided_slice %1 {offsets = [0, 0], sizes = [64, 1], strides = [1, 1]} : vector<64x4xf32> to vector<64x1xf32>
    %4 = vector.extract_strided_slice %0 {offsets = [0, 0], sizes = [1, 128], strides = [1, 1]} : vector<4x128xf32> to vector<1x128xf32>
    %5 = vector.broadcast %3 : vector<64x1xf32> to vector<64x128xf32>
    %6 = vector.broadcast %4 : vector<1x128xf32> to vector<64x128xf32>
    %7 = arith.mulf %5, %6 : vector<64x128xf32>
    %8 = vector.broadcast %2 : vector<64x1xf32> to vector<64x128xf32>
    %9 = arith.addf %8, %7 : vector<64x128xf32>
    %10 = vector.extract_strided_slice %1 {offsets = [0, 1], sizes = [64, 1], strides = [1, 1]} : vector<64x4xf32> to vector<64x1xf32>
    %11 = vector.extract_strided_slice %0 {offsets = [1, 0], sizes = [1, 128], strides = [1, 1]} : vector<4x128xf32> to vector<1x128xf32>
    %12 = vector.broadcast %10 : vector<64x1xf32> to vector<64x128xf32>
    %13 = vector.broadcast %11 : vector<1x128xf32> to vector<64x128xf32>
    %14 = arith.mulf %12, %13 : vector<64x128xf32>
    %15 = arith.addf %9, %14 : vector<64x128xf32>
    %16 = vector.extract_strided_slice %1 {offsets = [0, 2], sizes = [64, 1], strides = [1, 1]} : vector<64x4xf32> to vector<64x1xf32>
    %17 = vector.extract_strided_slice %0 {offsets = [2, 0], sizes = [1, 128], strides = [1, 1]} : vector<4x128xf32> to vector<1x128xf32>
    %18 = vector.broadcast %16 : vector<64x1xf32> to vector<64x128xf32>
    %19 = vector.broadcast %17 : vector<1x128xf32> to vector<64x128xf32>
    %20 = arith.mulf %18, %19 : vector<64x128xf32>
    %21 = arith.addf %15, %20 : vector<64x128xf32>
    %22 = vector.extract_strided_slice %1 {offsets = [0, 3], sizes = [64, 1], strides = [1, 1]} : vector<64x4xf32> to vector<64x1xf32>
    %23 = vector.extract_strided_slice %0 {offsets = [3, 0], sizes = [1, 128], strides = [1, 1]} : vector<4x128xf32> to vector<1x128xf32>
    %24 = vector.broadcast %22 : vector<64x1xf32> to vector<64x128xf32>
    %25 = vector.broadcast %23 : vector<1x128xf32> to vector<64x128xf32>
    %26 = arith.mulf %24, %25 : vector<64x128xf32>
    %27 = arith.addf %21, %26 : vector<64x128xf32>
    %cst = arith.constant 0.000000e+00 : f32
    %28 = vector.broadcast %cst : f32 to vector<64x128xf32>
    %29 = arith.maximumf %27, %28 : vector<64x128xf32>
    %c0_5 = arith.constant 0 : index
    %c0_6 = arith.constant 0 : index
    %30 = vector.load %arg4[%c0_5, %c0_6] : memref<3x64xf32, #tpu.memory_space<vmem>>, vector<3x64xf32>
    %cst_7 = arith.constant dense<0.000000e+00> : vector<3x128xf32>
    %31 = tpu.matmul %30, %29, %cst_7 {dimension_numbers = #tpu.dot_dimension_numbers<[1], [0], [0], [1], [0, 0, 1, 1], [], []>} : vector<3x64xf32>, vector<64x128xf32>, vector<3x128xf32> -> vector<3x128xf32>
    %c0_8 = arith.constant 0 : index
    %c0_9 = arith.constant 0 : index
    %32 = vector.load %arg5[%c0_8, %c0_9] : memref<3x1xf32, #tpu.memory_space<vmem>>, vector<3x1xf32>
    %33 = vector.broadcast %32 : vector<3x1xf32> to vector<3x128xf32>
    %34 = arith.addf %31, %33 : vector<3x128xf32>
    %c0_10 = arith.constant 0 : index
    %c0_11 = arith.constant 0 : index
    %35 = vector.load %arg6[%c0_10, %c0_11] : memref<3x128xf32, #tpu.memory_space<vmem>>, vector<3x128xf32>
    tpu.vector_store %arg6[%c0_10, %c0_11], %34 {strides = array<i32>} : memref<3x128xf32, #tpu.memory_space<vmem>>, vector<3x128xf32>,
    return
  }
  func.func @transform_0(%arg0: i32) -> (i32, i32) {
    %c0_i32 = arith.constant 0 : i32
    %c0_i32_0 = arith.constant 0 : i32
    return %c0_i32, %arg0 : i32, i32
  }
  func.func @transform_1(%arg0: i32) -> (i32, i32) {
    %c0_i32 = arith.constant 0 : i32
    %c0_i32_0 = arith.constant 0 : i32
    %c0_i32_1 = arith.constant 0 : i32
    return %c0_i32, %c0_i32_0 : i32, i32
  }
  func.func @transform_2(%arg0: i32) -> (i32, i32) {
    %c0_i32 = arith.constant 0 : i32
    %c0_i32_0 = arith.constant 0 : i32
    %c0_i32_1 = arith.constant 0 : i32
    return %c0_i32, %c0_i32_0 : i32, i32
  }
  func.func @transform_3(%arg0: i32) -> (i32, i32) {
    %c0_i32 = arith.constant 0 : i32
    %c0_i32_0 = arith.constant 0 : i32
    %c0_i32_1 = arith.constant 0 : i32
    return %c0_i32, %c0_i32_0 : i32, i32
  }
  func.func @transform_4(%arg0: i32) -> (i32, i32) {
    %c0_i32 = arith.constant 0 : i32
    %c0_i32_0 = arith.constant 0 : i32
    %c0_i32_1 = arith.constant 0 : i32
    return %c0_i32, %c0_i32_0 : i32, i32
  }
  func.func @transform_5(%arg0: i32) -> (i32, i32) {
    %c0_i32 = arith.constant 0 : i32
    %c0_i32_0 = arith.constant 0 : i32
    return %c0_i32, %arg0 : i32, i32
  }
}

</mosaic_0001>

<llo_original>
// kernel: net_forward.1
$region0: #{net_forward.1}
  #allocation0 [shape = 'u32[]', space=smem, size = 0x4, offset = 0x4, fixed_abs, tag = 'smem constant byte address 0x4 - core index']
  #allocation1 [shape = 'u32[144,128]{1,0:T(1,128)}', space=vmem, size = 0x12000, scoped, tag = 'internal scratch']
  %s0 = inlined_call_operand.vmem [shape: f32[4,128], index: 0, kind: input, shape index: {}]
  %s1 = inlined_call_operand.vmem [shape: f32[64,4], index: 1, kind: input, shape index: {}]
  %s2 = inlined_call_operand.vmem [shape: f32[64,1], index: 2, kind: input, shape index: {}]
  %s3 = inlined_call_operand.vmem [shape: f32[3,64], index: 3, kind: input, shape index: {}]
  %s4 = inlined_call_operand.vmem [shape: f32[3,1], index: 4, kind: input, shape index: {}]
  %s5 = inlined_call_operand.vmem [shape: f32[3,128], index: 5, kind: output, shape index: {}]
  %s6 = sld [smem:[#allocation0]]
  $region30: #{net_forward.1} parent=0
    _
  %s8 = ssub.s32 1, %s6
  %s9 = scalar_select 0, %s8, %s6
  // Predicated region
  $region2: #{net_forward.1} parent=0 // pred_check
    _
  $region3: #{net_forward.1} parent=0 // pred_check_branch
    %11 = sbr.rel (0) target = $region5
  $region4: #{net_forward.1} parent=0 // pred_region
    _
  $region5: #{net_forward.1} parent=0 // pred_fallthru
    _
  // Predicated region
  $region6: #{net_forward.1} parent=0 // pred_check
    _
  $region7: #{net_forward.1} parent=0 // pred_check_branch
    %13 = sbr.rel (0) target = $region9
  $region8: #{net_forward.1} parent=0 // pred_region
    _
  $region9: #{net_forward.1} parent=0 // pred_fallthru
    _
  // Predicated region
  $region10: #{net_forward.1} parent=0 // pred_check
    _
  $region11: #{net_forward.1} parent=0 // pred_check_branch
    %15 = sbr.rel (0) target = $region13
  $region12: #{net_forward.1} parent=0 // pred_region
    _
  $region13: #{net_forward.1} parent=0 // pred_fallthru
    _
  // Predicated region
  $region14: #{net_forward.1} parent=0 // pred_check
    _
  $region15: #{net_forward.1} parent=0 // pred_check_branch
    %17 = sbr.rel (0) target = $region17
  $region16: #{net_forward.1} parent=0 // pred_region
    _
  $region17: #{net_forward.1} parent=0 // pred_fallthru
    _
  // Predicated region
  $region18: #{net_forward.1} parent=0 // pred_check
    _
  $region19: #{net_forward.1} parent=0 // pred_check_branch
    %19 = sbr.rel (0) target = $region21
  $region20: #{net_forward.1} parent=0 // pred_region
    _
  $region21: #{net_forward.1} parent=0 // pred_fallthru
    _
  %v20 = vld [vmem:[%s0] sm:$0xf]
  %v21 = vld [vmem:[%s1] sm:$0xff]
  %v22 = vld [vmem:[%s1 + $0x8] sm:$0xff]
  %v23 = vld [vmem:[%s1 + $0x10] sm:$0xff]
  %v24 = vld [vmem:[%s1 + $0x18] sm:$0xff]
  %v25 = vld [vmem:[%s1 + $0x20] sm:$0xff]
  %v26 = vld [vmem:[%s1 + $0x28] sm:$0xff]
  %v27 = vld [vmem:[%s1 + $0x30] sm:$0xff]
  %v28 = vld [vmem:[%s1 + $0x38] sm:$0xff]
  %v29 = vld [vmem:[%s2] sm:$0xff]
  %v30 = vld [vmem:[%s2 + $0x8] sm:$0xff]
  %v31 = vld [vmem:[%s2 + $0x10] sm:$0xff]
  %v32 = vld [vmem:[%s2 + $0x18] sm:$0xff]
  %v33 = vld [vmem:[%s2 + $0x20] sm:$0xff]
  %v34 = vld [vmem:[%s2 + $0x28] sm:$0xff]
  %v35 = vld [vmem:[%s2 + $0x30] sm:$0xff]
  %v36 = vld [vmem:[%s2 + $0x38] sm:$0xff]
  %38 = vset.pattern.permute.xlu0 0
  %39 = vperm.xlu0 %38, %v21
  %v40 = vpop.permute.xlu0 %39
  %43 = vset.pattern.permute.xlu0 0
  %44 = vperm.xlu0 %43, %v22
  %v45 = vpop.permute.xlu0 %44
  %48 = vset.pattern.permute.xlu0 0
  %49 = vperm.xlu0 %48, %v23
  %v50 = vpop.permute.xlu0 %49
  %53 = vset.pattern.permute.xlu0 0
  %54 = vperm.xlu0 %53, %v24
  %v55 = vpop.permute.xlu0 %54
  %58 = vset.pattern.permute.xlu0 0
  %59 = vperm.xlu0 %58, %v25
  %v60 = vpop.permute.xlu0 %59
  %63 = vset.pattern.permute.xlu0 0
  %64 = vperm.xlu0 %63, %v26
  %v65 = vpop.permute.xlu0 %64
  %68 = vset.pattern.permute.xlu0 0
  %69 = vperm.xlu0 %68, %v27
  %v70 = vpop.permute.xlu0 %69
  %73 = vset.pattern.permute.xlu0 0
  %74 = vperm.xlu0 %73, %v28
  %v75 = vpop.permute.xlu0 %74
  %v77 = vlaneseq
  %v78 = vshrl.u32 %v77, 7
  %v79 = vsub.s32 0, %v78
  %v80 = vrot.slane %v20, %v79
  %v81 = vmul.f32 %v40, %v80
  %v82 = vmul.f32 %v45, %v80
  %v83 = vmul.f32 %v50, %v80
  %v84 = vmul.f32 %v55, %v80
  %v85 = vmul.f32 %v60, %v80
  %v86 = vmul.f32 %v65, %v80
  %v87 = vmul.f32 %v70, %v80
  %v88 = vmul.f32 %v75, %v80
  %90 = vset.pattern.permute.xlu0 0
  %91 = vperm.xlu0 %90, %v29
  %v92 = vpop.permute.xlu0 %91
  %95 = vset.pattern.permute.xlu0 0
  %96 = vperm.xlu0 %95, %v30
  %v97 = vpop.permute.xlu0 %96
  %100 = vset.pattern.permute.xlu0 0
  %101 = vperm.xlu0 %100, %v31
  %v102 = vpop.permute.xlu0 %101
  %105 = vset.pattern.permute.xlu0 0
  %106 = vperm.xlu0 %105, %v32
  %v107 = vpop.permute.xlu0 %106
  %110 = vset.pattern.permute.xlu0 0
  %111 = vperm.xlu0 %110, %v33
  %v112 = vpop.permute.xlu0 %111
  %115 = vset.pattern.permute.xlu0 0
  %116 = vperm.xlu0 %115, %v34
  %v117 = vpop.permute.xlu0 %116
  %120 = vset.pattern.permute.xlu0 0
  %121 = vperm.xlu0 %120, %v35
  %v122 = vpop.permute.xlu0 %121
  %125 = vset.pattern.permute.xlu0 0
  %126 = vperm.xlu0 %125, %v36
  %v127 = vpop.permute.xlu0 %126
  %v129 = vadd.f32 %v92, %v81
  %v130 = vadd.f32 %v97, %v82
  %v131 = vadd.f32 %v102, %v83
  %v132 = vadd.f32 %v107, %v84
  %v133 = vadd.f32 %v112, %v85
  %v134 = vadd.f32 %v117, %v86
  %v135 = vadd.f32 %v122, %v87
  %v136 = vadd.f32 %v127, %v88
  %137 = vset.pattern.permute.xlu0 1
  %138 = vperm.xlu0 %137, %v21
  %v139 = vpop.permute.xlu0 %138
  %141 = vset.pattern.permute.xlu0 1
  %142 = vperm.xlu0 %141, %v22
  %v143 = vpop.permute.xlu0 %142
  %145 = vset.pattern.permute.xlu0 1
  %146 = vperm.xlu0 %145, %v23
  %v147 = vpop.permute.xlu0 %146
  %149 = vset.pattern.permute.xlu0 1
  %150 = vperm.xlu0 %149, %v24
  %v151 = vpop.permute.xlu0 %150
  %153 = vset.pattern.permute.xlu0 1
  %154 = vperm.xlu0 %153, %v25
  %v155 = vpop.permute.xlu0 %154
  %157 = vset.pattern.permute.xlu0 1
  %158 = vperm.xlu0 %157, %v26
  %v159 = vpop.permute.xlu0 %158
  %161 = vset.pattern.permute.xlu0 1
  %162 = vperm.xlu0 %161, %v27
  %v163 = vpop.permute.xlu0 %162
  %165 = vset.pattern.permute.xlu0 1
  %166 = vperm.xlu0 %165, %v28
  %v167 = vpop.permute.xlu0 %166
  %v169 = vlaneseq
  %v170 = vshrl.u32 %v169, 7
  %v171 = vsub.s32 1, %v170
  %v172 = vrot.slane %v20, %v171
  %v173 = vmul.f32 %v139, %v172
  %v174 = vmul.f32 %v143, %v172
  %v175 = vmul.f32 %v147, %v172
  %v176 = vmul.f32 %v151, %v172
  %v177 = vmul.f32 %v155, %v172
  %v178 = vmul.f32 %v159, %v172
  %v179 = vmul.f32 %v163, %v172
  %v180 = vmul.f32 %v167, %v172
  %v181 = vadd.f32 %v129, %v173
  %v182 = vadd.f32 %v130, %v174
  %v183 = vadd.f32 %v131, %v175
  %v184 = vadd.f32 %v132, %v176
  %v185 = vadd.f32 %v133, %v177
  %v186 = vadd.f32 %v134, %v178
  %v187 = vadd.f32 %v135, %v179
  %v188 = vadd.f32 %v136, %v180
  %189 = vset.pattern.permute.xlu0 2
  %190 = vperm.xlu0 %189, %v21
  %v191 = vpop.permute.xlu0 %190
  %193 = vset.pattern.permute.xlu0 2
  %194 = vperm.xlu0 %193, %v22
  %v195 = vpop.permute.xlu0 %194
  %197 = vset.pattern.permute.xlu0 2
  %198 = vperm.xlu0 %197, %v23
  %v199 = vpop.permute.xlu0 %198
  %201 = vset.pattern.permute.xlu0 2
  %202 = vperm.xlu0 %201, %v24
  %v203 = vpop.permute.xlu0 %202
  %205 = vset.pattern.permute.xlu0 2
  %206 = vperm.xlu0 %205, %v25
  %v207 = vpop.permute.xlu0 %206
  %209 = vset.pattern.permute.xlu0 2
  %210 = vperm.xlu0 %209, %v26
  %v211 = vpop.permute.xlu0 %210
  %213 = vset.pattern.permute.xlu0 2
  %214 = vperm.xlu0 %213, %v27
  %v215 = vpop.permute.xlu0 %214
  %217 = vset.pattern.permute.xlu0 2
  %218 = vperm.xlu0 %217, %v28
  %v219 = vpop.permute.xlu0 %218
  %v221 = vlaneseq
  %v222 = vshrl.u32 %v221, 7
  %v223 = vsub.s32 2, %v222
  %v224 = vrot.slane %v20, %v223
  %v225 = vmul.f32 %v191, %v224
  %v226 = vmul.f32 %v195, %v224
  %v227 = vmul.f32 %v199, %v224
  %v228 = vmul.f32 %v203, %v224
  %v229 = vmul.f32 %v207, %v224
  %v230 = vmul.f32 %v211, %v224
  %v231 = vmul.f32 %v215, %v224
  %v232 = vmul.f32 %v219, %v224
  %v233 = vadd.f32 %v181, %v225
  %v234 = vadd.f32 %v182, %v226
  %v235 = vadd.f32 %v183, %v227
  %v236 = vadd.f32 %v184, %v228
  %v237 = vadd.f32 %v185, %v229
  %v238 = vadd.f32 %v186, %v230
  %v239 = vadd.f32 %v187, %v231
  %v240 = vadd.f32 %v188, %v232
  %241 = vset.pattern.permute.xlu0 3
  %242 = vperm.xlu0 %241, %v21
  %v243 = vpop.permute.xlu0 %242
  %245 = vset.pattern.permute.xlu0 3
  %246 = vperm.xlu0 %245, %v22
  %v247 = vpop.permute.xlu0 %246
  %249 = vset.pattern.permute.xlu0 3
  %250 = vperm.xlu0 %249, %v23
  %v251 = vpop.permute.xlu0 %250
  %253 = vset.pattern.permute.xlu0 3
  %254 = vperm.xlu0 %253, %v24
  %v255 = vpop.permute.xlu0 %254
  %257 = vset.pattern.permute.xlu0 3
  %258 = vperm.xlu0 %257, %v25
  %v259 = vpop.permute.xlu0 %258
  %261 = vset.pattern.permute.xlu0 3
  %262 = vperm.xlu0 %261, %v26
  %v263 = vpop.permute.xlu0 %262
  %265 = vset.pattern.permute.xlu0 3
  %266 = vperm.xlu0 %265, %v27
  %v267 = vpop.permute.xlu0 %266
  %269 = vset.pattern.permute.xlu0 3
  %270 = vperm.xlu0 %269, %v28
  %v271 = vpop.permute.xlu0 %270
  %v273 = vlaneseq
  %v274 = vshrl.u32 %v273, 7
  %v275 = vsub.s32 3, %v274
  %v276 = vrot.slane %v20, %v275
  %v277 = vmul.f32 %v243, %v276
  %v278 = vmul.f32 %v247, %v276
  %v279 = vmul.f32 %v251, %v276
  %v280 = vmul.f32 %v255, %v276
  %v281 = vmul.f32 %v259, %v276
  %v282 = vmul.f32 %v263, %v276
  %v283 = vmul.f32 %v267, %v276
  %v284 = vmul.f32 %v271, %v276
  %v285 = vadd.f32 %v233, %v277
  %v286 = vadd.f32 %v234, %v278
  %v287 = vadd.f32 %v235, %v279
  %v288 = vadd.f32 %v236, %v280
  %v289 = vadd.f32 %v237, %v281
  %v290 = vadd.f32 %v238, %v282
  %v291 = vadd.f32 %v239, %v283
  %v292 = vadd.f32 %v240, %v284
  %v293 = vmax.f32 %v285, 0.0
  %v294 = vmax.f32 %v286, 0.0
  %v295 = vmax.f32 %v287, 0.0
  %v296 = vmax.f32 %v288, 0.0
  %v297 = vmax.f32 %v289, 0.0
  %v298 = vmax.f32 %v290, 0.0
  %v299 = vmax.f32 %v291, 0.0
  %v300 = vmax.f32 %v292, 0.0
  %v301 = vld [vmem:[%s3] sm:$0x7]
  %v302 = vld [vmem:[%s4] sm:$0x7]
  %304 = vset.pattern.permute.xlu0 0
  %305 = vperm.xlu0 %304, %v302
  %v306 = vpop.permute.xlu0 %305
  %vm308 = vcmask 523264
  %v310 = vsel %vm308, %v301, 0
  %312 = vmatprep.subr.mxu0 0.0
  %313 = vmatpush1.msra.mxu0 %v293
  %314 = vmatprep.subr.mxu0 0.0
  %315 = vmatpush1.msra.mxu0 %v294
  %316 = vmatprep.subr.mxu0 0.0
  %317 = vmatpush1.msra.mxu0 %v295
  %318 = vmatprep.subr.mxu0 0.0
  %319 = vmatpush1.msra.mxu0 %v296
  %320 = vmatprep.subr.mxu0 0.0
  %321 = vmatpush1.msra.mxu0 %v297
  %322 = vmatprep.subr.mxu0 0.0
  %323 = vmatpush1.msra.mxu0 %v298
  %324 = vmatprep.subr.mxu0 0.0
  %325 = vmatpush1.msra.mxu0 %v299
  %326 = vmatprep.subr.mxu0 0.0
  %327 = vmatpush1.msra.mxu0 %v300
  %328 = vmatprep.subr.mxu0 0.0
  %329 = vmatpush1.msra.mxu0 0.0
  %330 = vmatprep.subr.mxu0 0.0
  %331 = vmatpush1.msra.mxu0 0.0
  %332 = vmatprep.subr.mxu0 0.0
  %333 = vmatpush1.msra.mxu0 0.0
  %334 = vmatprep.subr.mxu0 0.0
  %335 = vmatpush1.msra.mxu0 0.0
  %336 = vmatprep.subr.mxu0 0.0
  %337 = vmatpush1.msra.mxu0 0.0
  %338 = vmatprep.subr.mxu0 0.0
  %339 = vmatpush1.msra.mxu0 0.0
  %340 = vmatprep.subr.mxu0 0.0
  %341 = vmatpush1.msra.mxu0 0.0
  %342 = vmatprep.subr.mxu0 0.0
  %343 = vmatpush1.msra.mxu0 0.0
  %344 = vmatprep.subr.mxu0 0.0
  %345 = vmatpush1.msra.mxu0 0.0
  %346 = vmatprep.subr.mxu0 0.0
  %347 = vmatpush1.msra.mxu0 0.0
  %348 = vmatprep.subr.mxu0 0.0
  %349 = vmatpush1.msra.mxu0 0.0
  %350 = vmatprep.subr.mxu0 0.0
  %351 = vmatpush1.msra.mxu0 0.0
  %352 = vmatprep.subr.mxu0 0.0
  %353 = vmatpush1.msra.mxu0 0.0
  %354 = vmatprep.subr.mxu0 0.0
  %355 = vmatpush1.msra.mxu0 0.0
  %356 = vmatprep.subr.mxu0 0.0
  %357 = vmatpush1.msra.mxu0 0.0
  %358 = vmatprep.subr.mxu0 0.0
  %359 = vmatpush1.msra.mxu0 0.0
  %360 = vmatprep.subr.mxu0 0.0
  %361 = vmatpush1.msra.mxu0 0.0
  %362 = vmatprep.subr.mxu0 0.0
  %363 = vmatpush1.msra.mxu0 0.0
  %364 = vmatprep.subr.mxu0 0.0
  %365 = vmatpush1.msra.mxu0 0.0
  %366 = vmatprep.subr.mxu0 0.0
  %367 = vmatpush1.msra.mxu0 0.0
  %368 = vmatprep.subr.mxu0 0.0
  %369 = vmatpush1.msra.mxu0 0.0
  %370 = vmatprep.subr.mxu0 0.0
  %371 = vmatpush1.msra.mxu0 0.0
  %372 = vmatprep.subr.mxu0 0.0
  %373 = vmatpush1.msra.mxu0 0.0
  %374 = vmatprep.subr.mxu0 0.0
  %375 = vmatpush1.msra.mxu0 0.0
  %376 = vmatprep.mubr.f32.mxu0 0.0
  %377 = vmatmul.mubr.f32.gmra.mrb[0].mxu0 %v310
  %v378 = vpop.f32.mrb[0].mxu0
  %v379 = vadd.f32 %v306, %v378
  %v380 = vpop.f32.mrb[0].mxu0
  %381 = vdwg.mxu0
  %382 = vst [vmem:[%s5] sm:$0x7] %v379
  // Predicated region
  $region22: #{net_forward.1} parent=0 // pred_check
    _
  $region23: #{net_forward.1} parent=0 // pred_check_branch
    %384 = sbr.rel (0) target = $region25
  $region24: #{net_forward.1} parent=0 // pred_region
    _
  $region25: #{net_forward.1} parent=0 // pred_fallthru
    _
  // Predicated region
  $region26: #{net_forward.1} parent=0 // pred_check
    _
  $region27: #{net_forward.1} parent=0 // pred_check_branch
    %386 = sbr.rel (0) target = $region29
  $region28: #{net_forward.1} parent=0 // pred_region
    _
  $region29: #{net_forward.1} parent=0 // pred_fallthru
    _

</llo_original>
